<compile_context>
chip_gen: v6e
topology: v6e:2x2x1
jax: 0.10.0
libtpu: 0.0.40
codegen_flags: <defaults>
</compile_context>

<pallas_src>
import jax
import jax.numpy as jnp
from jax.experimental import pallas as pl
from jax.experimental.pallas import tpu as pltpu

BN_EPS = 1e-5


def _pick_tile(n, target, granule):
    """Largest tile t <= target with n % t == 0 and t % granule == 0.

    Falls back to the full dimension (always a legal full-dim block)."""
    if n <= target:
        return n
    t = target - (target % granule)
    while t >= granule:
        if n % t == 0:
            return t
        t -= granule
    return n


def _aggregate_kernel(adj_ref, xhi_src_ref, xlo_src_ref, xhi_dst_ref, xlo_dst_ref,
                      dinv_dst_ref, t_ref, s_ref, g_ref, acc_ref):
    """Phase 1: t = D^-1/2 (A+I) D^-1/2 @ x  (x already pre-scaled by D^-1/2 and split
    into bf16 hi/lo limbs), plus per-row-tile column sums and Gram matrix of t."""
    k = pl.program_id(1)
    nk = pl.num_programs(1)

    # Self-loop term of A_hat = A + I for this row tile:
    #   t[rows i] = dinv_i * ( sum_k A[i,k] @ xs_k + xs_i ),  xs = dinv * x.
    @pl.when(k == 0)
    def _():
        acc_ref[...] = (xhi_dst_ref[...].astype(jnp.float32)
                        + xlo_dst_ref[...].astype(jnp.float32))

    # Native bf16 MXU passes (no f32 emulation); f32 accumulation.  The hi/lo split of
    # the pre-scaled features recovers f32-level accuracy (adjacency 0/1 is exact bf16).
    adj = adj_ref[...]
    acc_ref[...] += jnp.dot(adj, xhi_src_ref[...], preferred_element_type=jnp.float32)
    acc_ref[...] += jnp.dot(adj, xlo_src_ref[...], preferred_element_type=jnp.float32)

    @pl.when(k == nk - 1)
    def _():
        t = dinv_dst_ref[...] * acc_ref[...]          # D^-1/2 on destination rows
        t_ref[...] = t
        # Per-row-tile partial stats (no cross-row-tile accumulation -> row axis stays
        # megacore-"parallel"); reduced over the tiny (n_i, ...) arrays in the wrapper.
        s_ref[...] = jnp.sum(t, axis=0, keepdims=True)[None]           # (1, 1, H)
        g_ref[...] = jax.lax.dot_general(                              # (1, H, H)
            t, t, dimension_numbers=(((0,), (0,)), ((), ())),
            preferred_element_type=jnp.float32)[None]


def _project_bn_relu_kernel(t_ref, w_ref, scale_ref, shift_ref, o_ref):
    """Phase 2: out = relu( (t @ W) * scale + shift ), scale/shift pre-fold conv bias,
    BN mean/var (training-mode batch stats), gamma and beta."""
    h = jnp.dot(t_ref[...], w_ref[...], preferred_element_type=jnp.float32)
    o_ref[...] = jnp.maximum(h * scale_ref[...] + shift_ref[...], 0.0).astype(o_ref.dtype)


def projection_gcd(x, adj, dinv, weight, bias, gamma, beta, *,
                   row_tile_target=2048, col_tile_target=2048,
                   out_tile_target=4096, vmem_limit_bytes=48 * 1024 * 1024):
    """x: [N, H] f32; adj: [N, N] dense 0/1 adjacency without self loops (bf16 ok);
    dinv: [N, 1] = (deg + 1)^-1/2 cached once per graph."""
    N, H = x.shape
    P = weight.shape[1]
    assert adj.shape == (N, N)
    assert dinv.shape == (N, 1)

    # Pre-fold D^-1/2 into x once (a single N*H pass) and split into bf16 hi/lo limbs
    # for the MXU.  This replaces the per-column-block in-kernel dinv multiply and the
    # padded (tk,1) dinv_src stream of the previous version.
    xs = dinv * x                                         # [N, H] f32
    xs_hi = xs.astype(jnp.bfloat16)
    xs_lo = (xs - xs_hi.astype(jnp.float32)).astype(jnp.bfloat16)
    adj_bf16 = adj if adj.dtype == jnp.bfloat16 else adj.astype(jnp.bfloat16)

    tm = _pick_tile(N, row_tile_target, 8)      # row tile  (sublane granule)
    tk = _pick_tile(N, col_tile_target, 128)    # col tile  (lane granule)
    n_i = N // tm
    n_k = N // tk

    cost_agg = pl.CostEstimate(
        flops=4 * N * N * H + 2 * N * H * H,
        transcendentals=0,
        bytes_accessed=N * N * 2 + (n_i + 1) * 2 * N * H * 2 + N * 4 + N * H * 4,
    )

    t, s_part, g_part = pl.pallas_call(
        _aggregate_kernel,
        out_shape=(
            jax.ShapeDtypeStruct((N, H), jnp.float32),        # t = A_norm @ x
            jax.ShapeDtypeStruct((n_i, 1, H), jnp.float32),   # partial column sums of t
            jax.ShapeDtypeStruct((n_i, H, H), jnp.float32),   # partial Gram t^T t
        ),
        grid_spec=pltpu.PrefetchScalarGridSpec(
            num_scalar_prefetch=0,
            grid=(n_i, n_k),                                  # reduction axis (k) last
            in_specs=[
                pl.BlockSpec((tm, tk), lambda i, k: (i, k)),   # adjacency tile (bf16)
                pl.BlockSpec((tk, H), lambda i, k: (k, 0)),    # xs hi (source nodes)
                pl.BlockSpec((tk, H), lambda i, k: (k, 0)),    # xs lo (source nodes)
                pl.BlockSpec((tm, H), lambda i, k: (i, 0)),    # xs hi (dest, self loop)
                pl.BlockSpec((tm, H), lambda i, k: (i, 0)),    # xs lo (dest, self loop)
                pl.BlockSpec((tm, 1), lambda i, k: (i, 0)),    # dinv (dest rows)
            ],
            out_specs=[
                pl.BlockSpec((tm, H), lambda i, k: (i, 0)),
                pl.BlockSpec((1, 1, H), lambda i, k: (i, 0, 0)),
                pl.BlockSpec((1, H, H), lambda i, k: (i, 0, 0)),
            ],
            scratch_shapes=[pltpu.VMEM((tm, H), jnp.float32)],
        ),
        compiler_params=pltpu.CompilerParams(
            # Stats are per-row-tile partials now, so the row axis is safely "parallel"
            # (v7x megacore); the k axis accumulates into acc/t and stays sequential.
            dimension_semantics=("parallel", "arbitrary"),
            vmem_limit_bytes=vmem_limit_bytes,
        ),
        cost_estimate=cost_agg,
    )(adj_bf16, xs_hi, xs_lo, xs_hi, xs_lo, dinv)

    # O(H*P) stat algebra (tiny, not O(N)): column sum / sum-of-squares of
    # h = t @ W + b derived from colsum(t) and the Gram matrix t^T t, then folded
    # with gamma/beta/bias into a single per-column scale/shift for phase 2.
    s = jnp.sum(s_part, axis=0)                               # (1, H)
    g = jnp.sum(g_part, axis=0)                               # (H, H)
    sw = s @ weight                                           # (1, P) = colsum(t @ W)
    col_sum = sw + N * bias                                   # (1, P)
    col_sumsq = (jnp.sum((g @ weight) * weight, axis=0, keepdims=True)
                 + 2.0 * bias * sw + N * bias * bias)         # (1, P)
    mean = col_sum / N
    # One-pass variance; fine for near-zero-mean activations (zero conv bias).
    var = jnp.maximum(col_sumsq / N - mean * mean, 0.0)
    scale = gamma * jax.lax.rsqrt(var + BN_EPS)               # (1, P)
    shift = (bias - mean) * scale + beta                      # (1, P)

    # Phase 2: streaming, row-parallel, lane-dense output (keep P a multiple of 128).
    tm2 = _pick_tile(N, out_tile_target, 8)
    n_i2 = N // tm2
    cost_proj = pl.CostEstimate(
        flops=2 * N * H * P + 3 * N * P,
        transcendentals=0,
        bytes_accessed=N * H * 4 + H * P * 4 + 2 * P * 4 + N * P * 4,
    )

    out = pl.pallas_call(
        _project_bn_relu_kernel,
        out_shape=jax.ShapeDtypeStruct((N, P), jnp.float32),
        grid_spec=pltpu.PrefetchScalarGridSpec(
            num_scalar_prefetch=0,
            grid=(n_i2,),
            in_specs=[
                pl.BlockSpec((tm2, H), lambda i: (i, 0)),      # t tile
                pl.BlockSpec((H, P), lambda i: (0, 0)),        # W
                pl.BlockSpec((1, P), lambda i: (0, 0)),        # scale
                pl.BlockSpec((1, P), lambda i: (0, 0)),        # shift
            ],
            out_specs=pl.BlockSpec((tm2, P), lambda i: (i, 0)),
        ),
        compiler_params=pltpu.CompilerParams(
            dimension_semantics=("parallel",),
            vmem_limit_bytes=vmem_limit_bytes,
        ),
        cost_estimate=cost_proj,
    )(t, weight, scale, shift)
    return out


def reference(x, adj, weight, bias, gamma, beta):
    N = x.shape[0]
    a_hat = adj + jnp.eye(N, dtype=adj.dtype)
    deg = jnp.sum(a_hat, axis=1)
    dinv = jnp.where(deg > 0, 1.0 / jnp.sqrt(deg), 0.0)
    adj_norm = (dinv[:, None] * a_hat) * dinv[None, :]
    h = adj_norm @ (x @ weight) + bias
    mean = jnp.mean(h, axis=0, keepdims=True)
    var = jnp.mean((h - mean) ** 2, axis=0, keepdims=True)
    y = (h - mean) / jnp.sqrt(var + BN_EPS) * gamma + beta
    return jnp.maximum(y, 0.0)


if __name__ == "__main__":
    # Small shapes consistent with the module: N nodes, hidden_channels, proj_dim.
    N = 64                 # number of graph nodes (BatchNorm1d batch dim)
    hidden_channels = 32
    proj_dim = 128

    key = jax.random.PRNGKey(0)
    k_x, k_adj, k_w, k_g, k_b = jax.random.split(key, 5)

    x = jax.random.normal(k_x, (N, hidden_channels), dtype=jnp.float32)

    # Deterministic random symmetric 0/1 adjacency (no self loops).
    a = (jax.random.uniform(k_adj, (N, N)) < 0.1).astype(jnp.float32)
    adj_f32 = jnp.clip(a + a.T, 0.0, 1.0) * (1.0 - jnp.eye(N, dtype=jnp.float32))
    # Kernel input stored as bf16: exact for 0/1 entries, halves adjacency HBM/VMEM.
    adj = adj_f32.astype(jnp.bfloat16)

    # gcn_norm glue cached ONCE per graph (graphs are static across training steps):
    # the per-step kernel never re-reads the N^2 adjacency for normalization.
    deg = jnp.sum(adj_f32, axis=1, keepdims=True) + 1.0       # [N, 1] (with self loop)
    dinv = jax.lax.rsqrt(deg)

    # GCNConv params: glorot-ish weight, zero bias. BatchNorm: gamma~1, beta~0
    # (perturbed slightly so the affine path is exercised).
    limit = (6.0 / (hidden_channels + proj_dim)) ** 0.5
    weight = jax.random.uniform(
        k_w, (hidden_channels, proj_dim), minval=-limit, maxval=limit,
        dtype=jnp.float32)
    bias = jnp.zeros((1, proj_dim), dtype=jnp.float32)
    gamma = 1.0 + 0.1 * jax.random.normal(k_g, (1, proj_dim), dtype=jnp.float32)
    beta = 0.1 * jax.random.normal(k_b, (1, proj_dim), dtype=jnp.float32)

    proj = jax.jit(projection_gcd)
    out = proj(x, adj, dinv, weight, bias, gamma, beta)
    out = jax.block_until_ready(out)

    ref = reference(x, adj_f32, weight, bias, gamma, beta)
    assert out.shape == (N, proj_dim)
    assert jnp.allclose(out, ref, atol=1e-4, rtol=1e-4), "mismatch vs reference"

    print("KERNEL_OK")
</pallas_src>

<mosaic_0001>
module attributes {stable_mosaic.version = 11 : i64} {
  func.func @_aggregate_kernel(%arg0: i32, %arg1: i32, %arg2: memref<64x64xbf16, #tpu.memory_space<vmem>>, %arg3: memref<64x32xbf16, #tpu.memory_space<vmem>>, %arg4: memref<64x32xbf16, #tpu.memory_space<vmem>>, %arg5: memref<64x32xbf16, #tpu.memory_space<vmem>>, %arg6: memref<64x32xbf16, #tpu.memory_space<vmem>>, %arg7: memref<64x1xf32, #tpu.memory_space<vmem>>, %arg8: memref<64x32xf32, #tpu.memory_space<vmem>>, %arg9: memref<1x1x32xf32, #tpu.memory_space<vmem>>, %arg10: memref<1x32x32xf32, #tpu.memory_space<vmem>>, %arg11: memref<64x32xf32, #tpu.memory_space<vmem>>) attributes {dimension_semantics = [#tpu.dimension_semantics<parallel>, #tpu.dimension_semantics<arbitrary>], iteration_bounds = array<i64: 1, 1>, scalar_prefetch = 0 : i64, scratch_operands = 1 : i64, tpu.core_type = #tpu.core_type<tc>, window_params = [{transform_indices = @transform_0, window_bounds = array<i64: 64, 64>}, {transform_indices = @transform_1, window_bounds = array<i64: 64, 32>}, {transform_indices = @transform_2, window_bounds = array<i64: 64, 32>}, {transform_indices = @transform_3, window_bounds = array<i64: 64, 32>}, {transform_indices = @transform_4, window_bounds = array<i64: 64, 32>}, {transform_indices = @transform_5, window_bounds = array<i64: 64, 1>}, {transform_indices = @transform_6, window_bounds = array<i64: 64, 32>}, {transform_indices = @transform_7, window_bounds = array<i64: 1, 1, 32>}, {transform_indices = @transform_8, window_bounds = array<i64: 1, 32, 32>}]} {
    %c0_i32 = arith.constant 0 : i32
    %0 = arith.cmpi eq, %arg1, %c0_i32 : i32
    %1 = arith.extui %0 : i1 to i32
    %c0_i32_0 = arith.constant 0 : i32
    %2 = arith.cmpi ne, %1, %c0_i32_0 : i32
    scf.if %2 {
      %c0_17 = arith.constant 0 : index
      %c0_18 = arith.constant 0 : index
      %17 = vector.load %arg5[%c0_17, %c0_18] : memref<64x32xbf16, #tpu.memory_space<vmem>>, vector<64x32xbf16>
      %18 = arith.extf %17 : vector<64x32xbf16> to vector<64x32xf32>
      %c0_19 = arith.constant 0 : index
      %c0_20 = arith.constant 0 : index
      %19 = vector.load %arg6[%c0_19, %c0_20] : memref<64x32xbf16, #tpu.memory_space<vmem>>, vector<64x32xbf16>
      %20 = arith.extf %19 : vector<64x32xbf16> to vector<64x32xf32>
      %21 = arith.addf %18, %20 : vector<64x32xf32>
      %c0_21 = arith.constant 0 : index
      %c0_22 = arith.constant 0 : index
      %22 = vector.load %arg11[%c0_21, %c0_22] : memref<64x32xf32, #tpu.memory_space<vmem>>, vector<64x32xf32>
      tpu.vector_store %arg11[%c0_21, %c0_22], %21 {strides = array<i32>} : memref<64x32xf32, #tpu.memory_space<vmem>>, vector<64x32xf32>,
    } else {
    }
    %c0 = arith.constant 0 : index
    %c0_1 = arith.constant 0 : index
    %3 = vector.load %arg2[%c0, %c0_1] : memref<64x64xbf16, #tpu.memory_space<vmem>>, vector<64x64xbf16>
    %c0_2 = arith.constant 0 : index
    %c0_3 = arith.constant 0 : index
    %4 = vector.load %arg11[%c0_2, %c0_3] : memref<64x32xf32, #tpu.memory_space<vmem>>, vector<64x32xf32>
    %c0_4 = arith.constant 0 : index
    %c0_5 = arith.constant 0 : index
    %5 = vector.load %arg3[%c0_4, %c0_5] : memref<64x32xbf16, #tpu.memory_space<vmem>>, vector<64x32xbf16>
    %cst = arith.constant dense<0.000000e+00> : vector<64x32xf32>
    %6 = tpu.matmul %3, %5, %cst {dimension_numbers = #tpu.dot_dimension_numbers<[1], [0], [0], [1], [0, 0, 1, 1], [], []>} : vector<64x64xbf16>, vector<64x32xbf16>, vector<64x32xf32> -> vector<64x32xf32>
    %7 = arith.addf %4, %6 : vector<64x32xf32>
    %c0_6 = arith.constant 0 : index
    %c0_7 = arith.constant 0 : index
    %8 = vector.load %arg11[%c0_6, %c0_7] : memref<64x32xf32, #tpu.memory_space<vmem>>, vector<64x32xf32>
    tpu.vector_store %arg11[%c0_6, %c0_7], %7 {strides = array<i32>} : memref<64x32xf32, #tpu.memory_space<vmem>>, vector<64x32xf32>,
    %c0_8 = arith.constant 0 : index
    %c0_9 = arith.constant 0 : index
    %9 = vector.load %arg11[%c0_8, %c0_9] : memref<64x32xf32, #tpu.memory_space<vmem>>, vector<64x32xf32>
    %c0_10 = arith.constant 0 : index
    %c0_11 = arith.constant 0 : index
    %10 = vector.load %arg4[%c0_10, %c0_11] : memref<64x32xbf16, #tpu.memory_space<vmem>>, vector<64x32xbf16>
    %cst_12 = arith.constant dense<0.000000e+00> : vector<64x32xf32>
    %11 = tpu.matmul %3, %10, %cst_12 {dimension_numbers = #tpu.dot_dimension_numbers<[1], [0], [0], [1], [0, 0, 1, 1], [], []>} : vector<64x64xbf16>, vector<64x32xbf16>, vector<64x32xf32> -> vector<64x32xf32>
    %12 = arith.addf %9, %11 : vector<64x32xf32>
    %c0_13 = arith.constant 0 : index
    %c0_14 = arith.constant 0 : index
    %13 = vector.load %arg11[%c0_13, %c0_14] : memref<64x32xf32, #tpu.memory_space<vmem>>, vector<64x32xf32>
    tpu.vector_store %arg11[%c0_13, %c0_14], %12 {strides = array<i32>} : memref<64x32xf32, #tpu.memory_space<vmem>>, vector<64x32xf32>,
    %c0_i32_15 = arith.constant 0 : i32
    %14 = arith.cmpi eq, %arg1, %c0_i32_15 : i32
    %15 = arith.extui %14 : i1 to i32
    %c0_i32_16 = arith.constant 0 : i32
    %16 = arith.cmpi ne, %15, %c0_i32_16 : i32
    scf.if %16 {
      %c0_17 = arith.constant 0 : index
      %c0_18 = arith.constant 0 : index
      %17 = vector.load %arg7[%c0_17, %c0_18] : memref<64x1xf32, #tpu.memory_space<vmem>>, vector<64x1xf32>
      %c0_19 = arith.constant 0 : index
      %c0_20 = arith.constant 0 : index
      %18 = vector.load %arg11[%c0_19, %c0_20] : memref<64x32xf32, #tpu.memory_space<vmem>>, vector<64x32xf32>
      %19 = vector.broadcast %17 : vector<64x1xf32> to vector<64x32xf32>
      %20 = arith.mulf %19, %18 : vector<64x32xf32>
      %c0_21 = arith.constant 0 : index
      %c0_22 = arith.constant 0 : index
      %21 = vector.load %arg8[%c0_21, %c0_22] : memref<64x32xf32, #tpu.memory_space<vmem>>, vector<64x32xf32>
      tpu.vector_store %arg8[%c0_21, %c0_22], %20 {strides = array<i32>} : memref<64x32xf32, #tpu.memory_space<vmem>>, vector<64x32xf32>,
      %cst_23 = arith.constant dense<0.000000e+00> : vector<32xf32>
      %22 = vector.multi_reduction <add>, %20, %cst_23 [0] : vector<64x32xf32> to vector<32xf32>
      %23 = vector.shape_cast %22 : vector<32xf32> to vector<1x32xf32>
      %24 = vector.shape_cast %23 : vector<1x32xf32> to vector<1x1x32xf32>
      %c0_24 = arith.constant 0 : index
      %c0_25 = arith.constant 0 : index
      %c0_26 = arith.constant 0 : index
      %25 = vector.load %arg9[%c0_24, %c0_25, %c0_26] : memref<1x1x32xf32, #tpu.memory_space<vmem>>, vector<1x1x32xf32>
      tpu.vector_store %arg9[%c0_24, %c0_25, %c0_26], %24 {strides = array<i32>} : memref<1x1x32xf32, #tpu.memory_space<vmem>>, vector<1x1x32xf32>,
      %cst_27 = arith.constant dense<0.000000e+00> : vector<32x32xf32>
      %26 = tpu.matmul %20, %20, %cst_27 {dimension_numbers = #tpu.dot_dimension_numbers<[0], [0], [1], [1], [0, 1, 1, 1], [], []>} : vector<64x32xf32>, vector<64x32xf32>, vector<32x32xf32> -> vector<32x32xf32>
      %27 = vector.shape_cast %26 : vector<32x32xf32> to vector<1x32x32xf32>
      %c0_28 = arith.constant 0 : index
      %c0_29 = arith.constant 0 : index
      %c0_30 = arith.constant 0 : index
      %28 = vector.load %arg10[%c0_28, %c0_29, %c0_30] : memref<1x32x32xf32, #tpu.memory_space<vmem>>, vector<1x32x32xf32>
      tpu.vector_store %arg10[%c0_28, %c0_29, %c0_30], %27 {strides = array<i32>} : memref<1x32x32xf32, #tpu.memory_space<vmem>>, vector<1x32x32xf32>,
    } else {
    }
    return
  }
  func.func @transform_0(%arg0: i32, %arg1: i32) -> (i32, i32) {
    %c0_i32 = arith.constant 0 : i32
    return %arg0, %arg1 : i32, i32
  }
  func.func @transform_1(%arg0: i32, %arg1: i32) -> (i32, i32) {
    %c0_i32 = arith.constant 0 : i32
    %c0_i32_0 = arith.constant 0 : i32
    return %arg1, %c0_i32 : i32, i32
  }
  func.func @transform_2(%arg0: i32, %arg1: i32) -> (i32, i32) {
    %c0_i32 = arith.constant 0 : i32
    %c0_i32_0 = arith.constant 0 : i32
    return %arg1, %c0_i32 : i32, i32
  }
  func.func @transform_3(%arg0: i32, %arg1: i32) -> (i32, i32) {
    %c0_i32 = arith.constant 0 : i32
    %c0_i32_0 = arith.constant 0 : i32
    return %arg0, %c0_i32 : i32, i32
  }
  func.func @transform_4(%arg0: i32, %arg1: i32) -> (i32, i32) {
    %c0_i32 = arith.constant 0 : i32
    %c0_i32_0 = arith.constant 0 : i32
    return %arg0, %c0_i32 : i32, i32
  }
  func.func @transform_5(%arg0: i32, %arg1: i32) -> (i32, i32) {
    %c0_i32 = arith.constant 0 : i32
    %c0_i32_0 = arith.constant 0 : i32
    return %arg0, %c0_i32 : i32, i32
  }
  func.func @transform_6(%arg0: i32, %arg1: i32) -> (i32, i32) {
    %c0_i32 = arith.constant 0 : i32
    %c0_i32_0 = arith.constant 0 : i32
    return %arg0, %c0_i32 : i32, i32
  }
  func.func @transform_7(%arg0: i32, %arg1: i32) -> (i32, i32, i32) {
    %c0_i32 = arith.constant 0 : i32
    %c0_i32_0 = arith.constant 0 : i32
    %c0_i32_1 = arith.constant 0 : i32
    return %arg0, %c0_i32, %c0_i32_0 : i32, i32, i32
  }
  func.func @transform_8(%arg0: i32, %arg1: i32) -> (i32, i32, i32) {
    %c0_i32 = arith.constant 0 : i32
    %c0_i32_0 = arith.constant 0 : i32
    %c0_i32_1 = arith.constant 0 : i32
    return %arg0, %c0_i32, %c0_i32_0 : i32, i32, i32
  }
}

module attributes {stable_mosaic.version = 11 : i64} {
  func.func @_project_bn_relu_kernel(%arg0: i32, %arg1: memref<64x32xf32, #tpu.memory_space<vmem>>, %arg2: memref<32x128xf32, #tpu.memory_space<vmem>>, %arg3: memref<1x128xf32, #tpu.memory_space<vmem>>, %arg4: memref<1x128xf32, #tpu.memory_space<vmem>>, %arg5: memref<64x128xf32, #tpu.memory_space<vmem>>) attributes {dimension_semantics = [#tpu.dimension_semantics<parallel>], iteration_bounds = array<i64: 1>, scalar_prefetch = 0 : i64, scratch_operands = 0 : i64, tpu.core_type = #tpu.core_type<tc>, window_params = [{transform_indices = @transform_0, window_bounds = array<i64: 64, 32>}, {pipeline_mode = #tpu.pipeline_mode<synchronous>, transform_indices = @transform_1, window_bounds = array<i64: 32, 128>}, {pipeline_mode = #tpu.pipeline_mode<synchronous>, transform_indices = @transform_2, window_bounds = array<i64: 1, 128>}, {pipeline_mode = #tpu.pipeline_mode<synchronous>, transform_indices = @transform_3, window_bounds = array<i64: 1, 128>}, {transform_indices = @transform_4, window_bounds = array<i64: 64, 128>}]} {
    %c0 = arith.constant 0 : index
    %c0_0 = arith.constant 0 : index
    %0 = vector.load %arg1[%c0, %c0_0] : memref<64x32xf32, #tpu.memory_space<vmem>>, vector<64x32xf32>
    %c0_1 = arith.constant 0 : index
    %c0_2 = arith.constant 0 : index
    %1 = vector.load %arg2[%c0_1, %c0_2] : memref<32x128xf32, #tpu.memory_space<vmem>>, vector<32x128xf32>
    %cst = arith.constant dense<0.000000e+00> : vector<64x128xf32>
    %2 = tpu.matmul %0, %1, %cst {dimension_numbers = #tpu.dot_dimension_numbers<[1], [0], [0], [1], [0, 0, 1, 1], [], []>} : vector<64x32xf32>, vector<32x128xf32>, vector<64x128xf32> -> vector<64x128xf32>
    %c0_3 = arith.constant 0 : index
    %c0_4 = arith.constant 0 : index
    %3 = vector.load %arg3[%c0_3, %c0_4] : memref<1x128xf32, #tpu.memory_space<vmem>>, vector<1x128xf32>
    %4 = vector.broadcast %3 : vector<1x128xf32> to vector<64x128xf32>
    %5 = arith.mulf %2, %4 : vector<64x128xf32>
    %c0_5 = arith.constant 0 : index
    %c0_6 = arith.constant 0 : index
    %6 = vector.load %arg4[%c0_5, %c0_6] : memref<1x128xf32, #tpu.memory_space<vmem>>, vector<1x128xf32>
    %7 = vector.broadcast %6 : vector<1x128xf32> to vector<64x128xf32>
    %8 = arith.addf %5, %7 : vector<64x128xf32>
    %cst_7 = arith.constant 0.000000e+00 : f32
    %9 = vector.broadcast %cst_7 : f32 to vector<64x128xf32>
    %10 = arith.maximumf %8, %9 : vector<64x128xf32>
    %c0_8 = arith.constant 0 : index
    %c0_9 = arith.constant 0 : index
    %11 = vector.load %arg5[%c0_8, %c0_9] : memref<64x128xf32, #tpu.memory_space<vmem>>, vector<64x128xf32>
    tpu.vector_store %arg5[%c0_8, %c0_9], %10 {strides = array<i32>} : memref<64x128xf32, #tpu.memory_space<vmem>>, vector<64x128xf32>,
    return
  }
  func.func @transform_0(%arg0: i32) -> (i32, i32) {
    %c0_i32 = arith.constant 0 : i32
    %c0_i32_0 = arith.constant 0 : i32
    return %arg0, %c0_i32 : i32, i32
  }
  func.func @transform_1(%arg0: i32) -> (i32, i32) {
    %c0_i32 = arith.constant 0 : i32
    %c0_i32_0 = arith.constant 0 : i32
    %c0_i32_1 = arith.constant 0 : i32
    return %c0_i32, %c0_i32_0 : i32, i32
  }
  func.func @transform_2(%arg0: i32) -> (i32, i32) {
    %c0_i32 = arith.constant 0 : i32
    %c0_i32_0 = arith.constant 0 : i32
    %c0_i32_1 = arith.constant 0 : i32
    return %c0_i32, %c0_i32_0 : i32, i32
  }
  func.func @transform_3(%arg0: i32) -> (i32, i32) {
    %c0_i32 = arith.constant 0 : i32
    %c0_i32_0 = arith.constant 0 : i32
    %c0_i32_1 = arith.constant 0 : i32
    return %c0_i32, %c0_i32_0 : i32, i32
  }
  func.func @transform_4(%arg0: i32) -> (i32, i32) {
    %c0_i32 = arith.constant 0 : i32
    %c0_i32_0 = arith.constant 0 : i32
    return %arg0, %c0_i32 : i32, i32
  }
}

</mosaic_0001>

<llo_original>
// kernel: projection_gcd.3
$region0: #{projection_gcd.3}
  #allocation0 [shape = 'u32[]', space=smem, size = 0x4, offset = 0x4, fixed_abs, tag = 'smem constant byte address 0x4 - core index']
  #allocation1 [shape = 'u32[144,128]{1,0:T(1,128)}', space=vmem, size = 0x12000, scoped, tag = 'internal scratch']
  %s0 = inlined_call_operand.vmem [shape: f32[64,32], index: 0, kind: input, shape index: {}]
  %s1 = inlined_call_operand.vmem [shape: f32[32,128], index: 1, kind: input, shape index: {}]
  %s2 = inlined_call_operand.vmem [shape: f32[1,128], index: 2, kind: input, shape index: {}]
  %s3 = inlined_call_operand.vmem [shape: f32[1,128], index: 3, kind: input, shape index: {}]
  %s4 = inlined_call_operand.hbm [shape: f32[64,128], index: 4, kind: output, shape index: {}]
  %s5 = sld [smem:[#allocation0]]
  $region26: #{projection_gcd.3} parent=0
    _
  %s7 = ssub.s32 1, %s5
  %s8 = scalar_select 0, %s7, %s5
  $region1: #{projection_gcd.3} parent=0
    #allocation2 [shape = 'u8[32768]{0}', space=vmem, size = 0x8000, scoped, tag = 'output window, operand 0, single buffered']
    #allocation3 [shape = 's32[1]{0}', space=sflag, size = 0x4, scoped, tag = 'scoped memory for projection_gcd.3']
    %9 = vsyncpa [#allocation3], 0
    // Predicated region
    $region2: #{projection_gcd.3} parent=1 // pred_check
      _
    $region3: #{projection_gcd.3} parent=1 // pred_check_branch
      %11 = sbr.rel (0) target = $region5
    $region4: #{projection_gcd.3} parent=1 // pred_region
      _
    $region5: #{projection_gcd.3} parent=1 // pred_fallthru
      _
    // Predicated region
    $region6: #{projection_gcd.3} parent=1 // pred_check
      _
    $region7: #{projection_gcd.3} parent=1 // pred_check_branch
      %13 = sbr.rel (0) target = $region9
    $region8: #{projection_gcd.3} parent=1 // pred_region
      _
    $region9: #{projection_gcd.3} parent=1 // pred_fallthru
      _
    // Predicated region
    $region10: #{projection_gcd.3} parent=1 // pred_check
      _
    $region11: #{projection_gcd.3} parent=1 // pred_check_branch
      %15 = sbr.rel (0) target = $region13
    $region12: #{projection_gcd.3} parent=1 // pred_region
      _
    $region13: #{projection_gcd.3} parent=1 // pred_fallthru
      _
    // Predicated region
    $region14: #{projection_gcd.3} parent=1 // pred_check
      _
    $region15: #{projection_gcd.3} parent=1 // pred_check_branch
      %17 = sbr.rel (0) target = $region17
    $region16: #{projection_gcd.3} parent=1 // pred_region
      _
    $region17: #{projection_gcd.3} parent=1 // pred_fallthru
      _
    %v18 = vld [vmem:[%s0] sm:$0xff]
    %v19 = vld [vmem:[%s0 + $0x8] sm:$0xff]
    %v20 = vld [vmem:[%s0 + $0x10] sm:$0xff]
    %v21 = vld [vmem:[%s0 + $0x18] sm:$0xff]
    %v22 = vld [vmem:[%s0 + $0x20] sm:$0xff]
    %v23 = vld [vmem:[%s0 + $0x28] sm:$0xff]
    %v24 = vld [vmem:[%s0 + $0x30] sm:$0xff]
    %v25 = vld [vmem:[%s0 + $0x38] sm:$0xff]
    %v26 = vld [vmem:[%s1] sm:$0xff]
    %v27 = vld [vmem:[%s1 + $0x8] sm:$0xff]
    %v28 = vld [vmem:[%s1 + $0x10] sm:$0xff]
    %v29 = vld [vmem:[%s1 + $0x18] sm:$0xff]
    %vm30 = vcmask 261120
    %v32 = vsel %vm30, %v18, 0
    %v35 = vsel %vm30, %v19, 0
    %v38 = vsel %vm30, %v20, 0
    %v41 = vsel %vm30, %v21, 0
    %v44 = vsel %vm30, %v22, 0
    %v47 = vsel %vm30, %v23, 0
    %v50 = vsel %vm30, %v24, 0
    %v53 = vsel %vm30, %v25, 0
    %55 = vmatprep.subr.mxu0 0.0
    %56 = vmatpush1.msra.mxu0 0.0
    %57 = vmatprep.subr.mxu0 0.0
    %58 = vmatpush1.msra.mxu0 0.0
    %59 = vmatprep.subr.mxu0 0.0
    %60 = vmatpush1.msra.mxu0 0.0
    %61 = vmatprep.subr.mxu0 0.0
    %62 = vmatpush1.msra.mxu0 0.0
    %63 = vmatprep.subr.mxu0 0.0
    %64 = vmatpush1.msra.mxu0 0.0
    %65 = vmatprep.subr.mxu0 0.0
    %66 = vmatpush1.msra.mxu0 0.0
    %67 = vmatprep.subr.mxu0 0.0
    %68 = vmatpush1.msra.mxu0 0.0
    %69 = vmatprep.subr.mxu0 0.0
    %70 = vmatpush1.msra.mxu0 0.0
    %71 = vmatprep.subr.mxu0 0.0
    %72 = vmatpush1.msra.mxu0 0.0
    %73 = vmatprep.subr.mxu0 0.0
    %74 = vmatpush1.msra.mxu0 0.0
    %75 = vmatprep.subr.mxu0 0.0
    %76 = vmatpush1.msra.mxu0 0.0
    %77 = vmatprep.subr.mxu0 0.0
    %78 = vmatpush1.msra.mxu0 0.0
    %79 = vmatprep.subr.mxu0 0.0
    %80 = vmatpush1.msra.mxu0 %v29
    %81 = vmatprep.subr.mxu0 0.0
    %82 = vmatpush1.msra.mxu0 %v28
    %83 = vmatprep.subr.mxu0 0.0
    %84 = vmatpush1.msra.mxu0 %v27
    %85 = vmatprep.subr.mxu0 0.0
    %86 = vmatpush1.msra.mxu0 %v26
    %87 = vmatprep.subr.mxu0 0.0
    %88 = vmatpush2.msra.mxu0 0.0
    %89 = vmatprep.subr.mxu0 0.0
    %90 = vmatpush2.msra.mxu0 0.0
    %91 = vmatprep.subr.mxu0 0.0
    %92 = vmatpush2.msra.mxu0 0.0
    %93 = vmatprep.subr.mxu0 0.0
    %94 = vmatpush2.msra.mxu0 0.0
    %95 = vmatprep.subr.mxu0 0.0
    %96 = vmatpush2.msra.mxu0 0.0
    %97 = vmatprep.subr.mxu0 0.0
    %98 = vmatpush2.msra.mxu0 0.0
    %99 = vmatprep.subr.mxu0 0.0
    %100 = vmatpush2.msra.mxu0 0.0
    %101 = vmatprep.subr.mxu0 0.0
    %102 = vmatpush2.msra.mxu0 0.0
    %103 = vmatprep.subr.mxu0 0.0
    %104 = vmatpush2.msra.mxu0 0.0
    %105 = vmatprep.subr.mxu0 0.0
    %106 = vmatpush2.msra.mxu0 0.0
    %107 = vmatprep.subr.mxu0 0.0
    %108 = vmatpush2.msra.mxu0 0.0
    %109 = vmatprep.subr.mxu0 0.0
    %110 = vmatpush2.msra.mxu0 0.0
    %111 = vmatprep.subr.mxu0 0.0
    %112 = vmatpush2.msra.mxu0 0.0
    %113 = vmatprep.subr.mxu0 0.0
    %114 = vmatpush2.msra.mxu0 0.0
    %115 = vmatprep.subr.mxu0 0.0
    %116 = vmatpush2.msra.mxu0 0.0
    %117 = vmatprep.subr.mxu0 0.0
    %118 = vmatpush2.msra.mxu0 0.0
    %119 = vmatprep.mubr.f32.mxu0 0.0
    %120 = vmatmul.mubr.f32.gmra.mxu0 %v32
    %v121 = vpop.f32.mrf.mxu0
    %v122 = vadd.f32 0.0, %v121
    %v123 = vpop.f32.mrf.mxu0
    %124 = vmatprep.mubr.f32.mxu0 0.0
    %125 = vmatmul.mubr.f32.gmra.mxu0 %v35
    %v126 = vpop.f32.mrf.mxu0
    %v127 = vadd.f32 0.0, %v126
    %v128 = vpop.f32.mrf.mxu0
    %129 = vmatprep.mubr.f32.mxu0 0.0
    %130 = vmatmul.mubr.f32.gmra.mxu0 %v38
    %v131 = vpop.f32.mrf.mxu0
    %v132 = vadd.f32 0.0, %v131
    %v133 = vpop.f32.mrf.mxu0
    %134 = vmatprep.mubr.f32.mxu0 0.0
    %135 = vmatmul.mubr.f32.gmra.mxu0 %v41
    %v136 = vpop.f32.mrf.mxu0
    %v137 = vadd.f32 0.0, %v136
    %v138 = vpop.f32.mrf.mxu0
    %139 = vmatprep.mubr.f32.mxu0 0.0
    %140 = vmatmul.mubr.f32.gmra.mxu0 %v44
    %v141 = vpop.f32.mrf.mxu0
    %v142 = vadd.f32 0.0, %v141
    %v143 = vpop.f32.mrf.mxu0
    %144 = vmatprep.mubr.f32.mxu0 0.0
    %145 = vmatmul.mubr.f32.gmra.mxu0 %v47
    %v146 = vpop.f32.mrf.mxu0
    %v147 = vadd.f32 0.0, %v146
    %v148 = vpop.f32.mrf.mxu0
    %149 = vmatprep.mubr.f32.mxu0 0.0
    %150 = vmatmul.mubr.f32.gmra.mxu0 %v50
    %v151 = vpop.f32.mrf.mxu0
    %v152 = vadd.f32 0.0, %v151
    %v153 = vpop.f32.mrf.mxu0
    %154 = vmatprep.mubr.f32.mxu0 0.0
    %155 = vmatmul.mubr.f32.gmra.mxu0 %v53
    %v156 = vpop.f32.mrf.mxu0
    %v157 = vadd.f32 0.0, %v156
    %v158 = vpop.f32.mrf.mxu0
    %159 = vdwg.mxu0
    %v160 = vld [vmem:[%s2] sm:$0x1]
    %v162 = vlaneseq
    %v163 = vshrl.u32 %v162, 7
    %v164 = vsub.s32 0, %v163
    %v165 = vrot.slane %v160, %v164
    %v167 = vmul.f32 %v122, %v165
    %v168 = vmul.f32 %v127, %v165
    %v169 = vmul.f32 %v132, %v165
    %v170 = vmul.f32 %v137, %v165
    %v171 = vmul.f32 %v142, %v165
    %v172 = vmul.f32 %v147, %v165
    %v173 = vmul.f32 %v152, %v165
    %v174 = vmul.f32 %v157, %v165
    %v175 = vld [vmem:[%s3] sm:$0x1]
    %v177 = vlaneseq
    %v178 = vshrl.u32 %v177, 7
    %v179 = vsub.s32 0, %v178
    %v180 = vrot.slane %v175, %v179
    %v182 = vadd.f32 %v167, %v180
    %v183 = vadd.f32 %v168, %v180
    %v184 = vadd.f32 %v169, %v180
    %v185 = vadd.f32 %v170, %v180
    %v186 = vadd.f32 %v171, %v180
    %v187 = vadd.f32 %v172, %v180
    %v188 = vadd.f32 %v173, %v180
    %v189 = vadd.f32 %v174, %v180
    %v190 = vmax.f32 %v182, 0.0
    %v191 = vmax.f32 %v183, 0.0
    %v192 = vmax.f32 %v184, 0.0
    %v193 = vmax.f32 %v185, 0.0
    %v194 = vmax.f32 %v186, 0.0
    %v195 = vmax.f32 %v187, 0.0
    %v196 = vmax.f32 %v188, 0.0
    %v197 = vmax.f32 %v189, 0.0
    %198 = vst [vmem:[#allocation2] sm:$0xff] %v190
    %199 = vst [vmem:[#allocation2 + $0x8] sm:$0xff] %v191
    %200 = vst [vmem:[#allocation2 + $0x10] sm:$0xff] %v192
    %201 = vst [vmem:[#allocation2 + $0x18] sm:$0xff] %v193
    %202 = vst [vmem:[#allocation2 + $0x20] sm:$0xff] %v194
    %203 = vst [vmem:[#allocation2 + $0x28] sm:$0xff] %v195
    %204 = vst [vmem:[#allocation2 + $0x30] sm:$0xff] %v196
    %205 = vst [vmem:[#allocation2 + $0x38] sm:$0xff] %v197
    // Predicated region
    $region18: #{projection_gcd.3} parent=1 // pred_check
      _
    $region19: #{projection_gcd.3} parent=1 // pred_check_branch
      %207 = sbr.rel (0) target = $region21
    $region20: #{projection_gcd.3} parent=1 // pred_region
      %s209 = ssub.s32 1024, 1024
      %210 = vsyncadd [#allocation3], %s209
      %s211 = sshll.u32 [#allocation2], 4
      %s212 = int_to_ptr.vmem [resolvable:$true] %s211
      %217 = dma.vmem_to_hbm [thread:$0]  %s212, 1024, %s4, [#allocation3], 128, 128, 8
    $region21: #{projection_gcd.3} parent=1 // pred_fallthru
      _
    // Predicated region
    $region22: #{projection_gcd.3} parent=1 // pred_check
      _
    $region23: #{projection_gcd.3} parent=1 // pred_check_branch
      %219 = sbr.rel (0) target = $region25
    $region24: #{projection_gcd.3} parent=1 // pred_region
      %220 = dma.done [#allocation3], 1024
    $region25: #{projection_gcd.3} parent=1 // pred_fallthru
      _
    %221 = vsyncpa [#allocation3], 1

// kernel: projection_gcd.2
$region0: #{projection_gcd.2}
  #allocation0 [shape = 'u32[]', space=smem, size = 0x4, offset = 0x4, fixed_abs, tag = 'smem constant byte address 0x4 - core index']
  #allocation1 [shape = 'u32[144,128]{1,0:T(1,128)}', space=vmem, size = 0x12000, scoped, tag = 'internal scratch']
  #allocation2 [shape = 'f32[64,32]{1,0:T(8,128)}', space=vmem, size = 0x8000, scoped, tag = 'scratch operand']
  %s0 = inlined_call_operand.vmem [shape: bf16[64,64], index: 0, kind: input, shape index: {}]
  %s1 = inlined_call_operand.vmem [shape: bf16[64,32], index: 1, kind: input, shape index: {}, may-alias: {1,3}]
  %s2 = inlined_call_operand.vmem [shape: bf16[64,32], index: 2, kind: input, shape index: {}, may-alias: {2,4}]
  %s3 = inlined_call_operand.vmem [shape: bf16[64,32], index: 3, kind: input, shape index: {}, may-alias: {1,3}]
  %s4 = inlined_call_operand.vmem [shape: bf16[64,32], index: 4, kind: input, shape index: {}, may-alias: {2,4}]
  %s5 = inlined_call_operand.vmem [shape: f32[64,1], index: 5, kind: input, shape index: {}]
  %s6 = inlined_call_operand.vmem [shape: f32[64,32], index: 6, kind: output, shape index: {0}]
  %s7 = inlined_call_operand.vmem [shape: f32[1,1,32], index: 7, kind: output, shape index: {1}]
  %s8 = inlined_call_operand.vmem [shape: f32[1,32,32], index: 8, kind: output, shape index: {2}]
  %9 = xla_tuple %s6, %s7, %s8
  %s10 = sld [smem:[#allocation0]]
  $region58: #{projection_gcd.2} parent=0
    _
  %s12 = ssub.s32 1, %s10
  %s13 = scalar_select 0, %s12, %s10
  // Predicated region
  $region2: #{projection_gcd.2} parent=0 // pred_check
    _
  $region3: #{projection_gcd.2} parent=0 // pred_check_branch
    %15 = sbr.rel (0) target = $region5
  $region4: #{projection_gcd.2} parent=0 // pred_region
    _
  $region5: #{projection_gcd.2} parent=0 // pred_fallthru
    _
  // Predicated region
  $region6: #{projection_gcd.2} parent=0 // pred_check
    _
  $region7: #{projection_gcd.2} parent=0 // pred_check_branch
    %17 = sbr.rel (0) target = $region9
  $region8: #{projection_gcd.2} parent=0 // pred_region
    _
  $region9: #{projection_gcd.2} parent=0 // pred_fallthru
    _
  // Predicated region
  $region10: #{projection_gcd.2} parent=0 // pred_check
    _
  $region11: #{projection_gcd.2} parent=0 // pred_check_branch
    %19 = sbr.rel (0) target = $region13
  $region12: #{projection_gcd.2} parent=0 // pred_region
    _
  $region13: #{projection_gcd.2} parent=0 // pred_fallthru
    _
  // Predicated region
  $region14: #{projection_gcd.2} parent=0 // pred_check
    _
  $region15: #{projection_gcd.2} parent=0 // pred_check_branch
    %21 = sbr.rel (0) target = $region17
  $region16: #{projection_gcd.2} parent=0 // pred_region
    _
  $region17: #{projection_gcd.2} parent=0 // pred_fallthru
    _
  // Predicated region
  $region18: #{projection_gcd.2} parent=0 // pred_check
    _
  $region19: #{projection_gcd.2} parent=0 // pred_check_branch
    %23 = sbr.rel (0) target = $region21
  $region20: #{projection_gcd.2} parent=0 // pred_region
    _
  $region21: #{projection_gcd.2} parent=0 // pred_fallthru
    _
  // Predicated region
  $region22: #{projection_gcd.2} parent=0 // pred_check
    _
  $region23: #{projection_gcd.2} parent=0 // pred_check_branch
    %25 = sbr.rel (0) target = $region25
  $region24: #{projection_gcd.2} parent=0 // pred_region
    _
  $region25: #{projection_gcd.2} parent=0 // pred_fallthru
    _
  %p27 = scmp.eq.s32.totalorder 0, 0
  // Predicated region
  $region26: #{projection_gcd.2} parent=0 // pred_check
    %p28 = pneg %p27
  $region27: #{projection_gcd.2} parent=0 // pred_check_branch
    %30 = sbr.rel (%p28) target = $region29
  $region28: #{projection_gcd.2} parent=0 // pred_region
    %v31 = vld [vmem:[%s3] sm:$0xf]
    %v32 = vld [vmem:[%s3 + $0x4] sm:$0xf]
    %v33 = vld [vmem:[%s3 + $0x8] sm:$0xf]
    %v34 = vld [vmem:[%s3 + $0xc] sm:$0xf]
    %v35 = vld [vmem:[%s3 + $0x10] sm:$0xf]
    %v36 = vld [vmem:[%s3 + $0x14] sm:$0xf]
    %v37 = vld [vmem:[%s3 + $0x18] sm:$0xf]
    %v38 = vld [vmem:[%s3 + $0x1c] sm:$0xf]
    %v39 = vunpack.c.l.bf16 %v31
    %v40 = vunpack.c.l.bf16 %v32
    %v41 = vunpack.c.l.bf16 %v33
    %v42 = vunpack.c.l.bf16 %v34
    %v43 = vunpack.c.l.bf16 %v35
    %v44 = vunpack.c.l.bf16 %v36
    %v45 = vunpack.c.l.bf16 %v37
    %v46 = vunpack.c.l.bf16 %v38
    %v47 = vld [vmem:[%s4] sm:$0xf]
    %v48 = vld [vmem:[%s4 + $0x4] sm:$0xf]
    %v49 = vld [vmem:[%s4 + $0x8] sm:$0xf]
    %v50 = vld [vmem:[%s4 + $0xc] sm:$0xf]
    %v51 = vld [vmem:[%s4 + $0x10] sm:$0xf]
    %v52 = vld [vmem:[%s4 + $0x14] sm:$0xf]
    %v53 = vld [vmem:[%s4 + $0x18] sm:$0xf]
    %v54 = vld [vmem:[%s4 + $0x1c] sm:$0xf]
    %v55 = vunpack.c.l.bf16 %v47
    %v56 = vunpack.c.l.bf16 %v48
    %v57 = vunpack.c.l.bf16 %v49
    %v58 = vunpack.c.l.bf16 %v50
    %v59 = vunpack.c.l.bf16 %v51
    %v60 = vunpack.c.l.bf16 %v52
    %v61 = vunpack.c.l.bf16 %v53
    %v62 = vunpack.c.l.bf16 %v54
    %v63 = vadd.f32 %v39, %v55
    %v64 = vadd.f32 %v40, %v56
    %v65 = vadd.f32 %v41, %v57
    %v66 = vadd.f32 %v42, %v58
    %v67 = vadd.f32 %v43, %v59
    %v68 = vadd.f32 %v44, %v60
    %v69 = vadd.f32 %v45, %v61
    %v70 = vadd.f32 %v46, %v62
    %vm71 = vcmask 261120
    %72 = vst.msk [vmem:[#allocation2] sm:$0xff] %vm71, %v63
    %73 = vst.msk [vmem:[#allocation2 + $0x8] sm:$0xff] %vm71, %v64
    %74 = vst.msk [vmem:[#allocation2 + $0x10] sm:$0xff] %vm71, %v65
    %75 = vst.msk [vmem:[#allocation2 + $0x18] sm:$0xff] %vm71, %v66
    %76 = vst.msk [vmem:[#allocation2 + $0x20] sm:$0xff] %vm71, %v67
    %77 = vst.msk [vmem:[#allocation2 + $0x28] sm:$0xff] %vm71, %v68
    %78 = vst.msk [vmem:[#allocation2 + $0x30] sm:$0xff] %vm71, %v69
    %79 = vst.msk [vmem:[#allocation2 + $0x38] sm:$0xff] %vm71, %v70
  $region29: #{projection_gcd.2} parent=0 // pred_fallthru
    _
  %v80 = vld [vmem:[%s0] sm:$0xf]
  %v81 = vld [vmem:[%s0 + $0x4] sm:$0xf]
  %v82 = vld [vmem:[%s0 + $0x8] sm:$0xf]
  %v83 = vld [vmem:[%s0 + $0xc] sm:$0xf]
  %v84 = vld [vmem:[%s0 + $0x10] sm:$0xf]
  %v85 = vld [vmem:[%s0 + $0x14] sm:$0xf]
  %v86 = vld [vmem:[%s0 + $0x18] sm:$0xf]
  %v87 = vld [vmem:[%s0 + $0x1c] sm:$0xf]
  %v88 = vld [vmem:[#allocation2] sm:$0xff]
  %v89 = vld [vmem:[#allocation2 + $0x8] sm:$0xff]
  %v90 = vld [vmem:[#allocation2 + $0x10] sm:$0xff]
  %v91 = vld [vmem:[#allocation2 + $0x18] sm:$0xff]
  %v92 = vld [vmem:[#allocation2 + $0x20] sm:$0xff]
  %v93 = vld [vmem:[#allocation2 + $0x28] sm:$0xff]
  %v94 = vld [vmem:[#allocation2 + $0x30] sm:$0xff]
  %v95 = vld [vmem:[#allocation2 + $0x38] sm:$0xff]
  %v96 = vld [vmem:[%s1] sm:$0xf]
  %v97 = vld [vmem:[%s1 + $0x4] sm:$0xf]
  %v98 = vld [vmem:[%s1 + $0x8] sm:$0xf]
  %v99 = vld [vmem:[%s1 + $0xc] sm:$0xf]
  %v100 = vld [vmem:[%s1 + $0x10] sm:$0xf]
  %v101 = vld [vmem:[%s1 + $0x14] sm:$0xf]
  %v102 = vld [vmem:[%s1 + $0x18] sm:$0xf]
  %v103 = vld [vmem:[%s1 + $0x1c] sm:$0xf]
  %v112 = vunpack.c.l.b16 %v80
  %v113 = vunpack.c.l.b16 %v81
  %v114 = vunpack.c.l.b16 %v82
  %v115 = vunpack.c.l.b16 %v83
  %v116 = vunpack.c.l.b16 %v84
  %v117 = vunpack.c.l.b16 %v85
  %v118 = vunpack.c.l.b16 %v86
  %v119 = vunpack.c.l.b16 %v87
  %v120 = vpack.c.b16 %v113, %v112
  %v121 = vpack.c.b16 %v115, %v114
  %v122 = vpack.c.b16 %v117, %v116
  %v123 = vpack.c.b16 %v119, %v118
  %v132 = vunpack.c.l.b16 %v96
  %v133 = vunpack.c.l.b16 %v97
  %v134 = vunpack.c.l.b16 %v98
  %v135 = vunpack.c.l.b16 %v99
  %v136 = vunpack.c.l.b16 %v100
  %v137 = vunpack.c.l.b16 %v101
  %v138 = vunpack.c.l.b16 %v102
  %v139 = vunpack.c.l.b16 %v103
  %v140 = vpack.c.b16 %v133, %v132
  %v141 = vpack.c.b16 %v135, %v134
  %v142 = vpack.c.b16 %v137, %v136
  %v143 = vpack.c.b16 %v139, %v138
  %vm148 = vcmask 523264
  %v150 = vsel %vm148, %v120, 0
  %v153 = vsel %vm148, %v121, 0
  %v156 = vsel %vm148, %v122, 0
  %v159 = vsel %vm148, %v123, 0
  %161 = vmatprep.subr.bf16.mxu0 0
  %162 = vmatpush1.bf16.msra.mxu0 0
  %163 = vmatprep.subr.bf16.mxu0 0
  %164 = vmatpush1.bf16.msra.mxu0 0
  %165 = vmatprep.subr.bf16.mxu0 0
  %166 = vmatpush1.bf16.msra.mxu0 0
  %167 = vmatprep.subr.bf16.mxu0 0
  %168 = vmatpush1.bf16.msra.mxu0 0
  %169 = vmatprep.subr.bf16.mxu0 0
  %170 = vmatpush1.bf16.msra.mxu0 %v143
  %171 = vmatprep.subr.bf16.mxu0 0
  %172 = vmatpush1.bf16.msra.mxu0 %v142
  %173 = vmatprep.subr.bf16.mxu0 0
  %174 = vmatpush1.bf16.msra.mxu0 %v141
  %175 = vmatprep.subr.bf16.mxu0 0
  %176 = vmatpush1.bf16.msra.mxu0 %v140
  %177 = vmatprep.subr.bf16.mxu0 0
  %178 = vmatpush2.bf16.msra.mxu0 0
  %179 = vmatprep.subr.bf16.mxu0 0
  %180 = vmatpush2.bf16.msra.mxu0 0
  %181 = vmatprep.subr.bf16.mxu0 0
  %182 = vmatpush2.bf16.msra.mxu0 0
  %183 = vmatprep.subr.bf16.mxu0 0
  %184 = vmatpush2.bf16.msra.mxu0 0
  %185 = vmatprep.subr.bf16.mxu0 0
  %186 = vmatpush2.bf16.msra.mxu0 0
  %187 = vmatprep.subr.bf16.mxu0 0
  %188 = vmatpush2.bf16.msra.mxu0 0
  %189 = vmatprep.subr.bf16.mxu0 0
  %190 = vmatpush2.bf16.msra.mxu0 0
  %191 = vmatprep.subr.bf16.mxu0 0
  %192 = vmatpush2.bf16.msra.mxu0 0
  %193 = vmatprep.mubr.bf16.mxu0 0
  %194 = vmatmul.mubr.bf16.gmra.mxu0 %v150
  %v195 = vpop.f32.mrf.mxu0
  %v196 = vadd.f32 0.0, %v195
  %v197 = vpop.f32.mrf.mxu0
  %v198 = vpop.f32.mrf.mxu0
  %v199 = vadd.f32 0.0, %v198
  %v200 = vpop.f32.mrf.mxu0
  %201 = vmatprep.mubr.bf16.mxu0 0
  %202 = vmatmul.mubr.bf16.gmra.mxu0 %v153
  %v203 = vpop.f32.mrf.mxu0
  %v204 = vadd.f32 0.0, %v203
  %v205 = vpop.f32.mrf.mxu0
  %v206 = vpop.f32.mrf.mxu0
  %v207 = vadd.f32 0.0, %v206
  %v208 = vpop.f32.mrf.mxu0
  %209 = vmatprep.mubr.bf16.mxu0 0
  %210 = vmatmul.mubr.bf16.gmra.mxu0 %v156
  %v211 = vpop.f32.mrf.mxu0
  %v212 = vadd.f32 0.0, %v211
  %v213 = vpop.f32.mrf.mxu0
  %v214 = vpop.f32.mrf.mxu0
  %v215 = vadd.f32 0.0, %v214
  %v216 = vpop.f32.mrf.mxu0
  %217 = vmatprep.mubr.bf16.mxu0 0
  %218 = vmatmul.mubr.bf16.gmra.mxu0 %v159
  %v219 = vpop.f32.mrf.mxu0
  %v220 = vadd.f32 0.0, %v219
  %v221 = vpop.f32.mrf.mxu0
  %v222 = vpop.f32.mrf.mxu0
  %v223 = vadd.f32 0.0, %v222
  %v224 = vpop.f32.mrf.mxu0
  %225 = vdwg.mxu0
  %v226 = vadd.f32 %v88, %v196
  %v227 = vadd.f32 %v89, %v199
  %v228 = vadd.f32 %v90, %v204
  %v229 = vadd.f32 %v91, %v207
  %v230 = vadd.f32 %v92, %v212
  %v231 = vadd.f32 %v93, %v215
  %v232 = vadd.f32 %v94, %v220
  %v233 = vadd.f32 %v95, %v223
  %vm234 = vcmask 261120
  %235 = vst.msk [vmem:[#allocation2] sm:$0xff] %vm234, %v226
  %236 = vst.msk [vmem:[#allocation2 + $0x8] sm:$0xff] %vm234, %v227
  %237 = vst.msk [vmem:[#allocation2 + $0x10] sm:$0xff] %vm234, %v228
  %238 = vst.msk [vmem:[#allocation2 + $0x18] sm:$0xff] %vm234, %v229
  %239 = vst.msk [vmem:[#allocation2 + $0x20] sm:$0xff] %vm234, %v230
  %240 = vst.msk [vmem:[#allocation2 + $0x28] sm:$0xff] %vm234, %v231
  %241 = vst.msk [vmem:[#allocation2 + $0x30] sm:$0xff] %vm234, %v232
  %242 = vst.msk [vmem:[#allocation2 + $0x38] sm:$0xff] %vm234, %v233
  %v243 = vld [vmem:[#allocation2] sm:$0xff]
  %v244 = vld [vmem:[#allocation2 + $0x8] sm:$0xff]
  %v245 = vld [vmem:[#allocation2 + $0x10] sm:$0xff]
  %v246 = vld [vmem:[#allocation2 + $0x18] sm:$0xff]
  %v247 = vld [vmem:[#allocation2 + $0x20] sm:$0xff]
  %v248 = vld [vmem:[#allocation2 + $0x28] sm:$0xff]
  %v249 = vld [vmem:[#allocation2 + $0x30] sm:$0xff]
  %v250 = vld [vmem:[#allocation2 + $0x38] sm:$0xff]
  %v251 = vld [vmem:[%s2] sm:$0xf]
  %v252 = vld [vmem:[%s2 + $0x4] sm:$0xf]
  %v253 = vld [vmem:[%s2 + $0x8] sm:$0xf]
  %v254 = vld [vmem:[%s2 + $0xc] sm:$0xf]
  %v255 = vld [vmem:[%s2 + $0x10] sm:$0xf]
  %v256 = vld [vmem:[%s2 + $0x14] sm:$0xf]
  %v257 = vld [vmem:[%s2 + $0x18] sm:$0xf]
  %v258 = vld [vmem:[%s2 + $0x1c] sm:$0xf]
  %v267 = vunpack.c.l.b16 %v251
  %v268 = vunpack.c.l.b16 %v252
  %v269 = vunpack.c.l.b16 %v253
  %v270 = vunpack.c.l.b16 %v254
  %v271 = vunpack.c.l.b16 %v255
  %v272 = vunpack.c.l.b16 %v256
  %v273 = vunpack.c.l.b16 %v257
  %v274 = vunpack.c.l.b16 %v258
  %v275 = vpack.c.b16 %v268, %v267
  %v276 = vpack.c.b16 %v270, %v269
  %v277 = vpack.c.b16 %v272, %v271
  %v278 = vpack.c.b16 %v274, %v273
  %283 = vmatprep.subr.bf16.mxu0 0
  %284 = vmatpush1.bf16.msra.mxu0 0
  %285 = vmatprep.subr.bf16.mxu0 0
  %286 = vmatpush1.bf16.msra.mxu0 0
  %287 = vmatprep.subr.bf16.mxu0 0
  %288 = vmatpush1.bf16.msra.mxu0 0
  %289 = vmatprep.subr.bf16.mxu0 0
  %290 = vmatpush1.bf16.msra.mxu0 0
  %291 = vmatprep.subr.bf16.mxu0 0
  %292 = vmatpush1.bf16.msra.mxu0 %v278
  %293 = vmatprep.subr.bf16.mxu0 0
  %294 = vmatpush1.bf16.msra.mxu0 %v277
  %295 = vmatprep.subr.bf16.mxu0 0
  %296 = vmatpush1.bf16.msra.mxu0 %v276
  %297 = vmatprep.subr.bf16.mxu0 0
  %298 = vmatpush1.bf16.msra.mxu0 %v275
  %299 = vmatprep.subr.bf16.mxu0 0
  %300 = vmatpush2.bf16.msra.mxu0 0
  %301 = vmatprep.subr.bf16.mxu0 0
  %302 = vmatpush2.bf16.msra.mxu0 0
  %303 = vmatprep.subr.bf16.mxu0 0
  %304 = vmatpush2.bf16.msra.mxu0 0
  %305 = vmatprep.subr.bf16.mxu0 0
  %306 = vmatpush2.bf16.msra.mxu0 0
  %307 = vmatprep.subr.bf16.mxu0 0
  %308 = vmatpush2.bf16.msra.mxu0 0
  %309 = vmatprep.subr.bf16.mxu0 0
  %310 = vmatpush2.bf16.msra.mxu0 0
  %311 = vmatprep.subr.bf16.mxu0 0
  %312 = vmatpush2.bf16.msra.mxu0 0
  %313 = vmatprep.subr.bf16.mxu0 0
  %314 = vmatpush2.bf16.msra.mxu0 0
  %315 = vmatprep.mubr.bf16.mxu0 0
  %316 = vmatmul.mubr.bf16.gmra.mxu0 %v150
  %v317 = vpop.f32.mrf.mxu0
  %v318 = vadd.f32 0.0, %v317
  %v319 = vpop.f32.mrf.mxu0
  %v320 = vpop.f32.mrf.mxu0
  %v321 = vadd.f32 0.0, %v320
  %v322 = vpop.f32.mrf.mxu0
  %323 = vmatprep.mubr.bf16.mxu0 0
  %324 = vmatmul.mubr.bf16.gmra.mxu0 %v153
  %v325 = vpop.f32.mrf.mxu0
  %v326 = vadd.f32 0.0, %v325
  %v327 = vpop.f32.mrf.mxu0
  %v328 = vpop.f32.mrf.mxu0
  %v329 = vadd.f32 0.0, %v328
  %v330 = vpop.f32.mrf.mxu0
  %331 = vmatprep.mubr.bf16.mxu0 0
  %332 = vmatmul.mubr.bf16.gmra.mxu0 %v156
  %v333 = vpop.f32.mrf.mxu0
  %v334 = vadd.f32 0.0, %v333
  %v335 = vpop.f32.mrf.mxu0
  %v336 = vpop.f32.mrf.mxu0
  %v337 = vadd.f32 0.0, %v336
  %v338 = vpop.f32.mrf.mxu0
  %339 = vmatprep.mubr.bf16.mxu0 0
  %340 = vmatmul.mubr.bf16.gmra.mxu0 %v159
  %v341 = vpop.f32.mrf.mxu0
  %v342 = vadd.f32 0.0, %v341
  %v343 = vpop.f32.mrf.mxu0
  %v344 = vpop.f32.mrf.mxu0
  %v345 = vadd.f32 0.0, %v344
  %v346 = vpop.f32.mrf.mxu0
  %347 = vdwg.mxu0
  %v348 = vadd.f32 %v243, %v318
  %v349 = vadd.f32 %v244, %v321
  %v350 = vadd.f32 %v245, %v326
  %v351 = vadd.f32 %v246, %v329
  %v352 = vadd.f32 %v247, %v334
  %v353 = vadd.f32 %v248, %v337
  %v354 = vadd.f32 %v249, %v342
  %v355 = vadd.f32 %v250, %v345
  %356 = vst.msk [vmem:[#allocation2] sm:$0xff] %vm234, %v348
  %357 = vst.msk [vmem:[#allocation2 + $0x8] sm:$0xff] %vm234, %v349
  %358 = vst.msk [vmem:[#allocation2 + $0x10] sm:$0xff] %vm234, %v350
  %359 = vst.msk [vmem:[#allocation2 + $0x18] sm:$0xff] %vm234, %v351
  %360 = vst.msk [vmem:[#allocation2 + $0x20] sm:$0xff] %vm234, %v352
  %361 = vst.msk [vmem:[#allocation2 + $0x28] sm:$0xff] %vm234, %v353
  %362 = vst.msk [vmem:[#allocation2 + $0x30] sm:$0xff] %vm234, %v354
  %363 = vst.msk [vmem:[#allocation2 + $0x38] sm:$0xff] %vm234, %v355
  // Predicated region
  $region30: #{projection_gcd.2} parent=0 // pred_check
    %p364 = pneg %p27
  $region31: #{projection_gcd.2} parent=0 // pred_check_branch
    %366 = sbr.rel (%p364) target = $region33
  $region32: #{projection_gcd.2} parent=0 // pred_region
    %v367 = vld [vmem:[%s5] sm:$0xff]
    %v368 = vld [vmem:[%s5 + $0x8] sm:$0xff]
    %v369 = vld [vmem:[%s5 + $0x10] sm:$0xff]
    %v370 = vld [vmem:[%s5 + $0x18] sm:$0xff]
    %v371 = vld [vmem:[%s5 + $0x20] sm:$0xff]
    %v372 = vld [vmem:[%s5 + $0x28] sm:$0xff]
    %v373 = vld [vmem:[%s5 + $0x30] sm:$0xff]
    %v374 = vld [vmem:[%s5 + $0x38] sm:$0xff]
    %v375 = vld [vmem:[#allocation2] sm:$0xff]
    %v376 = vld [vmem:[#allocation2 + $0x8] sm:$0xff]
    %v377 = vld [vmem:[#allocation2 + $0x10] sm:$0xff]
    %v378 = vld [vmem:[#allocation2 + $0x18] sm:$0xff]
    %v379 = vld [vmem:[#allocation2 + $0x20] sm:$0xff]
    %v380 = vld [vmem:[#allocation2 + $0x28] sm:$0xff]
    %v381 = vld [vmem:[#allocation2 + $0x30] sm:$0xff]
    %v382 = vld [vmem:[#allocation2 + $0x38] sm:$0xff]
    %384 = vset.pattern.permute.xlu0 0
    %385 = vperm.xlu0 %384, %v367
    %v386 = vpop.permute.xlu0 %385
    %389 = vset.pattern.permute.xlu0 0
    %390 = vperm.xlu0 %389, %v368
    %v391 = vpop.permute.xlu0 %390
    %394 = vset.pattern.permute.xlu0 0
    %395 = vperm.xlu0 %394, %v369
    %v396 = vpop.permute.xlu0 %395
    %399 = vset.pattern.permute.xlu0 0
    %400 = vperm.xlu0 %399, %v370
    %v401 = vpop.permute.xlu0 %400
    %404 = vset.pattern.permute.xlu0 0
    %405 = vperm.xlu0 %404, %v371
    %v406 = vpop.permute.xlu0 %405
    %409 = vset.pattern.permute.xlu0 0
    %410 = vperm.xlu0 %409, %v372
    %v411 = vpop.permute.xlu0 %410
    %414 = vset.pattern.permute.xlu0 0
    %415 = vperm.xlu0 %414, %v373
    %v416 = vpop.permute.xlu0 %415
    %419 = vset.pattern.permute.xlu0 0
    %420 = vperm.xlu0 %419, %v374
    %v421 = vpop.permute.xlu0 %420
    %v423 = vmul.f32 %v386, %v375
    %v424 = vmul.f32 %v391, %v376
    %v425 = vmul.f32 %v396, %v377
    %v426 = vmul.f32 %v401, %v378
    %v427 = vmul.f32 %v406, %v379
    %v428 = vmul.f32 %v411, %v380
    %v429 = vmul.f32 %v416, %v381
    %v430 = vmul.f32 %v421, %v382
    %431 = vst.msk [vmem:[%s6] sm:$0xff] %vm234, %v423
    %432 = vst.msk [vmem:[%s6 + $0x8] sm:$0xff] %vm234, %v424
    %433 = vst.msk [vmem:[%s6 + $0x10] sm:$0xff] %vm234, %v425
    %434 = vst.msk [vmem:[%s6 + $0x18] sm:$0xff] %vm234, %v426
    %435 = vst.msk [vmem:[%s6 + $0x20] sm:$0xff] %vm234, %v427
    %436 = vst.msk [vmem:[%s6 + $0x28] sm:$0xff] %vm234, %v428
    %437 = vst.msk [vmem:[%s6 + $0x30] sm:$0xff] %vm234, %v429
    %438 = vst.msk [vmem:[%s6 + $0x38] sm:$0xff] %vm234, %v430
    %v439 = vsel %vm234, %v423, 0.0
    %v440 = vsel %vm234, %v424, 0.0
    %v441 = vadd.f32 %v439, %v440
    %v442 = vsel %vm234, %v425, 0.0
    %v443 = vadd.f32 %v441, %v442
    %v444 = vsel %vm234, %v426, 0.0
    %v445 = vadd.f32 %v443, %v444
    %v446 = vsel %vm234, %v427, 0.0
    %v447 = vadd.f32 %v445, %v446
    %v448 = vsel %vm234, %v428, 0.0
    %v449 = vadd.f32 %v447, %v448
    %v450 = vsel %vm234, %v429, 0.0
    %v451 = vadd.f32 %v449, %v450
    %v452 = vsel %vm234, %v430, 0.0
    %v453 = vadd.f32 %v451, %v452
    %v454 = vrot.slane %v453, 4
    %v455 = vadd.f32 %v453, %v454
    %v456 = vrot.slane %v455, 2
    %v457 = vadd.f32 %v455, %v456
    %v458 = vrot.slane %v457, 1
    %v459 = vadd.f32 %v457, %v458
    %vm460 = vcmask 253952
    %461 = vst.msk [vmem:[%s7] sm:$0x1] %vm460, %v459
    %462 = vxpose.xlu0.b32.start [1/16] %v423, 128
    %463 = vxpose.xlu0.b32.cont [2/16] %v424, 128
    %464 = vxpose.xlu0.b32.cont [3/16] %v425, 128
    %465 = vxpose.xlu0.b32.cont [4/16] %v426, 128
    %466 = vxpose.xlu0.b32.cont [5/16] %v427, 128
    %467 = vxpose.xlu0.b32.cont [6/16] %v428, 128
    %468 = vxpose.xlu0.b32.cont [7/16] %v429, 128
    %469 = vxpose.xlu0.b32.cont [8/16] %v430, 128
    %470 = vxpose.xlu0.b32.cont [9/16] 0.0, 128
    %471 = vxpose.xlu0.b32.cont [10/16] 0.0, 128
    %472 = vxpose.xlu0.b32.cont [11/16] 0.0, 128
    %473 = vxpose.xlu0.b32.cont [12/16] 0.0, 128
    %474 = vxpose.xlu0.b32.cont [13/16] 0.0, 128
    %475 = vxpose.xlu0.b32.cont [14/16] 0.0, 128
    %476 = vxpose.xlu0.b32.cont [15/16] 0.0, 128
    %477 = vxpose.xlu0.b32.end [16/16] 0.0, 128
    %v478 = vpop.trf.xlu0
    %v479 = vpop.trf.xlu0
    %v480 = vpop.trf.xlu0
    %v481 = vpop.trf.xlu0
    %v482 = vpop.trf.xlu0
    %v483 = vpop.trf.xlu0
    %v484 = vpop.trf.xlu0
    %v485 = vpop.trf.xlu0
    %v486 = vpop.trf.xlu0
    %v487 = vpop.trf.xlu0
    %v488 = vpop.trf.xlu0
    %v489 = vpop.trf.xlu0
    %v490 = vpop.trf.xlu0
    %v491 = vpop.trf.xlu0
    %v492 = vpop.trf.xlu0
    %v493 = vpop.trf.xlu0
    %v495 = vsel %vm148, %v478, 0
    %v498 = vsel %vm148, %v479, 0
    %v501 = vsel %vm148, %v480, 0
    %v504 = vsel %vm148, %v481, 0
    %506 = vmatprep.subr.mxu0 0.0
    %507 = vmatpush1.msra.mxu0 0.0
    %508 = vmatprep.subr.mxu0 0.0
    %509 = vmatpush1.msra.mxu0 0.0
    %510 = vmatprep.subr.mxu0 0.0
    %511 = vmatpush1.msra.mxu0 0.0
    %512 = vmatprep.subr.mxu0 0.0
    %513 = vmatpush1.msra.mxu0 0.0
    %514 = vmatprep.subr.mxu0 0.0
    %515 = vmatpush1.msra.mxu0 0.0
    %516 = vmatprep.subr.mxu0 0.0
    %517 = vmatpush1.msra.mxu0 0.0
    %518 = vmatprep.subr.mxu0 0.0
    %519 = vmatpush1.msra.mxu0 0.0
    %520 = vmatprep.subr.mxu0 0.0
    %521 = vmatpush1.msra.mxu0 0.0
    %522 = vmatprep.subr.mxu0 0.0
    %523 = vmatpush1.msra.mxu0 %v430
    %524 = vmatprep.subr.mxu0 0.0
    %525 = vmatpush1.msra.mxu0 %v429
    %526 = vmatprep.subr.mxu0 0.0
    %527 = vmatpush1.msra.mxu0 %v428
    %528 = vmatprep.subr.mxu0 0.0
    %529 = vmatpush1.msra.mxu0 %v427
    %530 = vmatprep.subr.mxu0 0.0
    %531 = vmatpush1.msra.mxu0 %v426
    %532 = vmatprep.subr.mxu0 0.0
    %533 = vmatpush1.msra.mxu0 %v425
    %534 = vmatprep.subr.mxu0 0.0
    %535 = vmatpush1.msra.mxu0 %v424
    %536 = vmatprep.subr.mxu0 0.0
    %537 = vmatpush1.msra.mxu0 %v423
    %538 = vmatprep.subr.mxu0 0.0
    %539 = vmatpush2.msra.mxu0 0.0
    %540 = vmatprep.subr.mxu0 0.0
    %541 = vmatpush2.msra.mxu0 0.0
    %542 = vmatprep.subr.mxu0 0.0
    %543 = vmatpush2.msra.mxu0 0.0
    %544 = vmatprep.subr.mxu0 0.0
    %545 = vmatpush2.msra.mxu0 0.0
    %546 = vmatprep.subr.mxu0 0.0
    %547 = vmatpush2.msra.mxu0 0.0
    %548 = vmatprep.subr.mxu0 0.0
    %549 = vmatpush2.msra.mxu0 0.0
    %550 = vmatprep.subr.mxu0 0.0
    %551 = vmatpush2.msra.mxu0 0.0
    %552 = vmatprep.subr.mxu0 0.0
    %553 = vmatpush2.msra.mxu0 0.0
    %554 = vmatprep.subr.mxu0 0.0
    %555 = vmatpush2.msra.mxu0 0.0
    %556 = vmatprep.subr.mxu0 0.0
    %557 = vmatpush2.msra.mxu0 0.0
    %558 = vmatprep.subr.mxu0 0.0
    %559 = vmatpush2.msra.mxu0 0.0
    %560 = vmatprep.subr.mxu0 0.0
    %561 = vmatpush2.msra.mxu0 0.0
    %562 = vmatprep.subr.mxu0 0.0
    %563 = vmatpush2.msra.mxu0 0.0
    %564 = vmatprep.subr.mxu0 0.0
    %565 = vmatpush2.msra.mxu0 0.0
    %566 = vmatprep.subr.mxu0 0.0
    %567 = vmatpush2.msra.mxu0 0.0
    %568 = vmatprep.subr.mxu0 0.0
    %569 = vmatpush2.msra.mxu0 0.0
    %570 = vmatprep.mubr.f32.mxu0 0.0
    %571 = vmatmul.mubr.f32.gmra.mxu0 %v495
    %v572 = vpop.f32.mrf.mxu0
    %v573 = vadd.f32 0.0, %v572
    %v574 = vpop.f32.mrf.mxu0
    %575 = vmatprep.mubr.f32.mxu0 0.0
    %576 = vmatmul.mubr.f32.gmra.mxu0 %v498
    %v577 = vpop.f32.mrf.mxu0
    %v578 = vadd.f32 0.0, %v577
    %v579 = vpop.f32.mrf.mxu0
    %580 = vmatprep.mubr.f32.mxu0 0.0
    %581 = vmatmul.mubr.f32.gmra.mxu0 %v501
    %v582 = vpop.f32.mrf.mxu0
    %v583 = vadd.f32 0.0, %v582
    %v584 = vpop.f32.mrf.mxu0
    %585 = vmatprep.mubr.f32.mxu0 0.0
    %586 = vmatmul.mubr.f32.gmra.mxu0 %v504
    %v587 = vpop.f32.mrf.mxu0
    %v588 = vadd.f32 0.0, %v587
    %v589 = vpop.f32.mrf.mxu0
    %590 = vdwg.mxu0
    %591 = vst.msk [vmem:[%s8] sm:$0xff] %vm234, %v573
    %592 = vst.msk [vmem:[%s8 + $0x8] sm:$0xff] %vm234, %v578
    %593 = vst.msk [vmem:[%s8 + $0x10] sm:$0xff] %vm234, %v583
    %594 = vst.msk [vmem:[%s8 + $0x18] sm:$0xff] %vm234, %v588
  $region33: #{projection_gcd.2} parent=0 // pred_fallthru
    _
  // Predicated region
  $region34: #{projection_gcd.2} parent=0 // pred_check
    _
  $region35: #{projection_gcd.2} parent=0 // pred_check_branch
    %596 = sbr.rel (0) target = $region37
  $region36: #{projection_gcd.2} parent=0 // pred_region
    _
  $region37: #{projection_gcd.2} parent=0 // pred_fallthru
    _
  // Predicated region
  $region38: #{projection_gcd.2} parent=0 // pred_check
    _
  $region39: #{projection_gcd.2} parent=0 // pred_check_branch
    %598 = sbr.rel (0) target = $region41
  $region40: #{projection_gcd.2} parent=0 // pred_region
    _
  $region41: #{projection_gcd.2} parent=0 // pred_fallthru
    _
  // Predicated region
  $region42: #{projection_gcd.2} parent=0 // pred_check
    _
  $region43: #{projection_gcd.2} parent=0 // pred_check_branch
    %600 = sbr.rel (0) target = $region45
  $region44: #{projection_gcd.2} parent=0 // pred_region
    _
  $region45: #{projection_gcd.2} parent=0 // pred_fallthru
    _
  // Predicated region
  $region46: #{projection_gcd.2} parent=0 // pred_check
    _
  $region47: #{projection_gcd.2} parent=0 // pred_check_branch
    %602 = sbr.rel (0) target = $region49
  $region48: #{projection_gcd.2} parent=0 // pred_region
    _
  $region49: #{projection_gcd.2} parent=0 // pred_fallthru
    _
  // Predicated region
  $region50: #{projection_gcd.2} parent=0 // pred_check
    _
  $region51: #{projection_gcd.2} parent=0 // pred_check_branch
    %604 = sbr.rel (0) target = $region53
  $region52: #{projection_gcd.2} parent=0 // pred_region
    _
  $region53: #{projection_gcd.2} parent=0 // pred_fallthru
    _
  // Predicated region
  $region54: #{projection_gcd.2} parent=0 // pred_check
    _
  $region55: #{projection_gcd.2} parent=0 // pred_check_branch
    %606 = sbr.rel (0) target = $region57
  $region56: #{projection_gcd.2} parent=0 // pred_region
    _
  $region57: #{projection_gcd.2} parent=0 // pred_fallthru
    _

</llo_original>
